<compile_context>
chip_gen: v7x
topology: tpu7x:2x2x1
jax: 0.10.0
libtpu: 0.0.40
codegen_flags: <defaults>
</compile_context>

<pallas_src>
import math
import functools

import jax
import jax.numpy as jnp
from jax.experimental import pallas as pl
from jax.experimental.pallas import tpu as pltpu


# --------------------------------------------------------------------------- #
# Helpers
# --------------------------------------------------------------------------- #
def _round_up(x, m):
    return ((x + m - 1) // m) * m


def _sublane_multiple(dtype):
    """Batch-tile rounding so the (TB, C) output block stays sublane-aligned."""
    itemsize = jnp.dtype(dtype).itemsize
    if itemsize >= 4:
        return 8
    if itemsize == 2:
        return 16
    return 32


def _vmem_plan():
    """(vmem_limit_bytes, x_tile_target_bytes), generation-aware."""
    cap = 128 * 1024 * 1024
    try:
        info = pltpu.get_tpu_info()
        cap = int(getattr(info, "vmem_capacity_bytes", cap))
    except Exception:
        pass
    if cap <= 64 * 1024 * 1024:
        # v7x: 64 MiB per TensorCore -> smaller total budget, but larger tiles
        # (3.2 TB/s HBM makes the ~0.35us per-step overhead relatively larger).
        return 48 * 1024 * 1024, 6 * 1024 * 1024
    # v5e / v6e: 128 MiB physical VMEM.
    return 96 * 1024 * 1024, 8 * 1024 * 1024


def _pick_td(D, target):
    """Largest multiple of 128 that divides D, is <= target and <= D//2."""
    if D % 128 != 0 or D < 256:
        return None
    best = None
    t = 128
    hi = min(D // 2, target)
    while t <= hi:
        if D % t == 0:
            best = t
        t += 128
    return best


def _choose_tiles(B, C, D, x_dtype, w_dtype, force_split_d=False):
    """Pick (tb, td, d_chunk, vmem_limit).  td is None for the resident-weight path."""
    x_item = jnp.dtype(x_dtype).itemsize
    w_item = jnp.dtype(w_dtype).itemsize
    mult = _sublane_multiple(x_dtype)
    vmem_limit, x_tile_target = _vmem_plan()
    headroom = 6 * 1024 * 1024

    # Tile the reduction (D) axis into the grid only when the resident weight
    # (double-buffered by default) would eat too much of the VMEM budget.
    split_d = force_split_d or (2 * C * D * w_item > (vmem_limit - headroom) // 3)
    td = _pick_td(D, 2048) if split_d else None
    if td is None:
        split_d = False
    d_eff = td if split_d else D
    d_chunk = d_eff if split_d else min(D, 512)

    # VMEM accounting per batch row of a tile (x/out auto double-buffered by
    # BlockSpec; f32 temporaries live only for one d_chunk at a time).
    per_row = (2 * C * d_eff * x_item      # x tile, 2 buffers
               + 2 * C * x_item            # out tile, 2 buffers
               + 2 * C * d_chunk * 4       # f32 mul/reduce temporaries
               + 2 * C * 4)                # f32 accumulator (+slack)
    # Resident weight + bias cost 2x (default double-buffering; the second
    # buffer is subtracted from the batch-tile budget instead of being elided).
    fixed = 2 * C * d_eff * w_item + 2 * max(C, 128) * w_item + headroom
    avail = max(vmem_limit - fixed, mult * per_row)

    tb = min(max(1, x_tile_target // max(1, C * d_eff * x_item)),
             avail // max(1, per_row))
    tb = max(mult, (tb // mult) * mult)

    b_ceil = _round_up(B, mult)
    tb = min(tb, b_ceil)
    # Keep at least 2 batch grid steps when the batch allows it, so v7x's two
    # TensorCores both get work on the "parallel" axis.
    if b_ceil >= 2 * mult:
        tb = min(tb, _round_up((b_ceil + 1) // 2, mult))
    tb = max(mult, tb)
    return tb, (td if split_d else None), d_chunk, vmem_limit


# --------------------------------------------------------------------------- #
# Kernels
# --------------------------------------------------------------------------- #
def _ew_kernel(x_ref, w_ref, b_ref, o_ref, *, d_chunk):
    """Resident-weight path.  x:(TB,C,D) w:(C,D) b:(1,C) -> o:(TB,C)."""
    D = x_ref.shape[-1]
    acc = jnp.zeros(o_ref.shape, jnp.float32)
    # Static chunking over D keeps f32 temporaries bounded by (TB, C, d_chunk).
    for start in range(0, D, d_chunk):
        size = min(d_chunk, D - start)
        xs = x_ref[:, :, start:start + size].astype(jnp.float32)
        ws = w_ref[:, start:start + size].astype(jnp.float32)
        acc = acc + jnp.sum(xs * ws, axis=2)
    o_ref[...] = (acc + b_ref[...].astype(jnp.float32)).astype(o_ref.dtype)


def _ew_kernel_split_d(x_ref, w_ref, b_ref, o_ref, acc_ref):
    """D-tiled path.  Grid=(batch, d); acc_ref:(TB,C) f32 scratch accumulator."""
    d = pl.program_id(1)

    @pl.when(d == 0)
    def _():
        acc_ref[...] = jnp.zeros_like(acc_ref)

    x = x_ref[...].astype(jnp.float32)
    w = w_ref[...].astype(jnp.float32)
    acc_ref[...] += jnp.sum(x * w, axis=2)

    @pl.when(d == pl.num_programs(1) - 1)
    def _():
        o_ref[...] = (acc_ref[...] + b_ref[...].astype(jnp.float32)).astype(o_ref.dtype)


# --------------------------------------------------------------------------- #
# pallas_call wrappers
# --------------------------------------------------------------------------- #
@functools.partial(jax.jit, static_argnames=("tb", "d_chunk", "vmem_limit"))
def _ew_pallas_resident(x, weight, bias_row, tb, d_chunk, vmem_limit):
    B, C, D = x.shape
    kernel = functools.partial(_ew_kernel, d_chunk=d_chunk)
    return pl.pallas_call(
        kernel,
        out_shape=jax.ShapeDtypeStruct((B, C), x.dtype),
        grid_spec=pltpu.PrefetchScalarGridSpec(
            num_scalar_prefetch=0,
            grid=(pl.cdiv(B, tb),),                              # no jnp.pad: ragged last block
            in_specs=[
                pl.BlockSpec((tb, C, D), lambda b: (b, 0, 0)),   # batch-tile slab
                pl.BlockSpec((C, D), lambda b: (0, 0)),          # resident weight
                pl.BlockSpec((1, C), lambda b: (0, 0)),          # resident bias row
            ],
            out_specs=pl.BlockSpec((tb, C), lambda b: (b, 0)),
        ),
        compiler_params=pltpu.CompilerParams(
            dimension_semantics=("parallel",),
            vmem_limit_bytes=vmem_limit,
        ),
    )(x, weight, bias_row)


@functools.partial(jax.jit, static_argnames=("tb", "td", "vmem_limit"))
def _ew_pallas_split_d(x, weight, bias_row, tb, td, vmem_limit):
    B, C, D = x.shape
    return pl.pallas_call(
        _ew_kernel_split_d,
        out_shape=jax.ShapeDtypeStruct((B, C), x.dtype),
        grid_spec=pltpu.PrefetchScalarGridSpec(
            num_scalar_prefetch=0,
            grid=(pl.cdiv(B, tb), D // td),                       # D % td == 0 by construction
            in_specs=[
                pl.BlockSpec((tb, C, td), lambda b, d: (b, 0, d)),
                pl.BlockSpec((C, td), lambda b, d: (0, d)),
                pl.BlockSpec((1, C), lambda b, d: (0, 0)),
            ],
            out_specs=pl.BlockSpec((tb, C), lambda b, d: (b, 0)),
            scratch_shapes=[pltpu.VMEM((tb, C), jnp.float32)],
        ),
        compiler_params=pltpu.CompilerParams(
            dimension_semantics=("parallel", "arbitrary"),
            vmem_limit_bytes=vmem_limit,
        ),
    )(x, weight, bias_row)


# --------------------------------------------------------------------------- #
# Public entry point
# --------------------------------------------------------------------------- #
def _reference(x, weight, bias):
    out = jnp.sum(x.astype(jnp.float32) * weight.astype(jnp.float32)[None], axis=2)
    out = out + bias.astype(jnp.float32)
    return out.astype(x.dtype)


def element_wise_layer(x, weight, bias=None, *, force_pallas=False, force_split_d=False):
    """x: (B, C, D), weight: (C, D), bias: (C,) or None -> (B, C)."""
    B, C, D = x.shape
    assert weight.shape == (C, D)
    if bias is None:
        bias = jnp.zeros((C,), dtype=weight.dtype)
    assert bias.shape == (C,)

    itemsize = jnp.dtype(x.dtype).itemsize
    total_bytes = B * C * D * itemsize
    # Tiny or badly-shaped problems (C < 8 / D < 128 pad up to (8,128) vreg
    # tiles and lower to masked partial stores): plain XLA is better there.
    if not force_pallas and (total_bytes < (1 << 20) or D < 128 or C < 8):
        return _reference(x, weight, bias)

    tb, td, d_chunk, vmem_limit = _choose_tiles(
        B, C, D, x.dtype, weight.dtype, force_split_d=force_split_d)
    bias_row = bias.reshape(1, C)

    if td is not None:
        return _ew_pallas_split_d(x, weight, bias_row, tb, td, vmem_limit)
    return _ew_pallas_resident(x, weight, bias_row, tb, d_chunk, vmem_limit)


# --------------------------------------------------------------------------- #
# Self-test
# --------------------------------------------------------------------------- #
if __name__ == "__main__":
    key = jax.random.PRNGKey(0)

    def init_params(k, C, D, dtype=jnp.float32):
        kw, kb = jax.random.split(k)
        stdv = 1.0 / math.sqrt(D)
        w = jax.random.uniform(kw, (C, D), dtype, minval=-stdv, maxval=stdv)
        b = jax.random.uniform(kb, (C,), dtype, minval=-stdv, maxval=stdv)
        return w, b

    k1, k2, k3, k4, k5, k6, key = jax.random.split(key, 7)

    # Case 1: small shape consistent with the module (batch=2, classNum=4, featureDim=32).
    B, C, D = 2, 4, 32
    w1, b1 = init_params(k1, C, D)
    x1 = jax.random.normal(k2, (B, C, D), jnp.float32)
    out1 = jax.block_until_ready(element_wise_layer(x1, w1, b1, force_pallas=True))
    assert out1.shape == (B, C)
    assert jnp.allclose(out1, _reference(x1, w1, b1), atol=1e-5, rtol=1e-5)

    # Case 2: ragged batch (exercises the no-pad grid=pl.cdiv path).
    B2, C2, D2 = 50, 8, 128
    w2, b2 = init_params(k3, C2, D2)
    x2 = jax.random.normal(k4, (B2, C2, D2), jnp.float32)
    out2 = jax.block_until_ready(element_wise_layer(x2, w2, b2, force_pallas=True))
    assert out2.shape == (B2, C2)
    assert jnp.allclose(out2, _reference(x2, w2, b2), atol=1e-5, rtol=1e-5)

    # Case 3: forced D-tiled reduction-grid path (accumulator scratch + pl.when).
    B3, C3, D3 = 16, 16, 512
    w3, b3 = init_params(k5, C3, D3)
    x3 = jax.random.normal(k6, (B3, C3, D3), jnp.float32)
    out3 = jax.block_until_ready(
        element_wise_layer(x3, w3, b3, force_pallas=True, force_split_d=True))
    assert out3.shape == (B3, C3)
    assert jnp.allclose(out3, _reference(x3, w3, b3), atol=1e-4, rtol=1e-4)

    # Case 4: default dispatcher (tiny shape -> plain XLA) and bias=None.
    out4 = jax.block_until_ready(element_wise_layer(x1, w1, None))
    assert jnp.allclose(out4, _reference(x1, w1, jnp.zeros((C,), jnp.float32)),
                        atol=1e-5, rtol=1e-5)

    print("KERNEL_OK")
</pallas_src>

<mosaic_0001>
module attributes {stable_mosaic.version = 11 : i64} {
  func.func @_ew_kernel(%arg0: i32, %arg1: memref<8x4x32xf32, #tpu.memory_space<vmem>>, %arg2: memref<4x32xf32, #tpu.memory_space<vmem>>, %arg3: memref<1x4xf32, #tpu.memory_space<vmem>>, %arg4: memref<8x4xf32, #tpu.memory_space<vmem>>) attributes {dimension_semantics = [#tpu.dimension_semantics<parallel>], iteration_bounds = array<i64: 1>, scalar_prefetch = 0 : i64, scratch_operands = 0 : i64, tpu.core_type = #tpu.core_type<tc>, window_params = [{transform_indices = @transform_0, window_bounds = array<i64: 8, 4, 32>}, {pipeline_mode = #tpu.pipeline_mode<synchronous>, transform_indices = @transform_1, window_bounds = array<i64: 4, 32>}, {pipeline_mode = #tpu.pipeline_mode<synchronous>, transform_indices = @transform_2, window_bounds = array<i64: 1, 4>}, {transform_indices = @transform_3, window_bounds = array<i64: 8, 4>}]} {
    %cst = arith.constant 0.000000e+00 : f32
    %0 = vector.broadcast %cst : f32 to vector<8x4xf32>
    %c0 = arith.constant 0 : index
    %c0_0 = arith.constant 0 : index
    %c0_1 = arith.constant 0 : index
    %1 = vector.load %arg1[%c0, %c0_0, %c0_1] : memref<8x4x32xf32, #tpu.memory_space<vmem>>, vector<8x4x32xf32>
    %c0_2 = arith.constant 0 : index
    %c0_3 = arith.constant 0 : index
    %2 = vector.load %arg2[%c0_2, %c0_3] : memref<4x32xf32, #tpu.memory_space<vmem>>, vector<4x32xf32>
    %3 = vector.shape_cast %2 : vector<4x32xf32> to vector<1x4x32xf32>
    %4 = vector.broadcast %3 : vector<1x4x32xf32> to vector<8x4x32xf32>
    %5 = arith.mulf %1, %4 : vector<8x4x32xf32>
    %cst_4 = arith.constant dense<0.000000e+00> : vector<8x4xf32>
    %6 = vector.multi_reduction <add>, %5, %cst_4 [2] : vector<8x4x32xf32> to vector<8x4xf32>
    %7 = arith.addf %0, %6 : vector<8x4xf32>
    %c0_5 = arith.constant 0 : index
    %c0_6 = arith.constant 0 : index
    %8 = vector.load %arg3[%c0_5, %c0_6] : memref<1x4xf32, #tpu.memory_space<vmem>>, vector<1x4xf32>
    %9 = vector.broadcast %8 : vector<1x4xf32> to vector<8x4xf32>
    %10 = arith.addf %7, %9 : vector<8x4xf32>
    %c0_7 = arith.constant 0 : index
    %c0_8 = arith.constant 0 : index
    %11 = vector.load %arg4[%c0_7, %c0_8] : memref<8x4xf32, #tpu.memory_space<vmem>>, vector<8x4xf32>
    tpu.vector_store %arg4[%c0_7, %c0_8], %10 {strides = array<i32>} : memref<8x4xf32, #tpu.memory_space<vmem>>, vector<8x4xf32>,
    return
  }
  func.func @transform_0(%arg0: i32) -> (i32, i32, i32) {
    %c0_i32 = arith.constant 0 : i32
    %c0_i32_0 = arith.constant 0 : i32
    %c0_i32_1 = arith.constant 0 : i32
    return %arg0, %c0_i32, %c0_i32_0 : i32, i32, i32
  }
  func.func @transform_1(%arg0: i32) -> (i32, i32) {
    %c0_i32 = arith.constant 0 : i32
    %c0_i32_0 = arith.constant 0 : i32
    %c0_i32_1 = arith.constant 0 : i32
    return %c0_i32, %c0_i32_0 : i32, i32
  }
  func.func @transform_2(%arg0: i32) -> (i32, i32) {
    %c0_i32 = arith.constant 0 : i32
    %c0_i32_0 = arith.constant 0 : i32
    %c0_i32_1 = arith.constant 0 : i32
    return %c0_i32, %c0_i32_0 : i32, i32
  }
  func.func @transform_3(%arg0: i32) -> (i32, i32) {
    %c0_i32 = arith.constant 0 : i32
    %c0_i32_0 = arith.constant 0 : i32
    return %arg0, %c0_i32 : i32, i32
  }
}

</mosaic_0001>

<llo_original>
// kernel: _ew_pallas_resident.1
$region0: #{_ew_pallas_resident.1}
  #allocation0 [shape = 'u32[]', space=smem, size = 0x4, offset = 0x4, fixed_abs, tag = 'smem constant byte address 0x4 - core index']
  #allocation1 [shape = 'u32[144,128]{1,0:T(1,128)}', space=vmem, size = 0x12000, scoped, tag = 'internal scratch']
  %s0 = inlined_call_operand.hbm [shape: f32[2,4,32], index: 0, kind: input, shape index: {}]
  %s1 = inlined_call_operand.hbm [shape: f32[4,32], index: 1, kind: input, shape index: {}]
  %s2 = inlined_call_operand.hbm [shape: f32[1,4], index: 2, kind: input, shape index: {}]
  %s3 = inlined_call_operand.hbm [shape: f32[2,4], index: 3, kind: output, shape index: {}]
  %s4 = sld [smem:[#allocation0]]
  $region34: #{_ew_pallas_resident.1} parent=0
    _
  %s6 = ssub.s32 1, %s4
  %s7 = scalar_select 0, %s6, %s4
  $region1: #{_ew_pallas_resident.1} parent=0
    #allocation2 [shape = 'u8[16384]{0}', space=vmem, size = 0x4000, scoped, tag = 'input window, operand 0, single buffered']
    #allocation3 [shape = 's32[1]{0}', space=sflag, size = 0x4, scoped, tag = 'scoped memory for _ew_pallas_resident.1']
    #allocation4 [shape = 's32[1]{0}', space=sflag, size = 0x4, scoped, tag = 'scoped memory for _ew_pallas_resident.1']
    #allocation5 [shape = 'u8[2048]{0}', space=vmem, size = 0x800, scoped, tag = 'input window, operand 1, single buffered']
    #allocation6 [shape = 's32[1]{0}', space=sflag, size = 0x4, scoped, tag = 'scoped memory for _ew_pallas_resident.1']
    #allocation7 [shape = 'u8[512]{0}', space=vmem, size = 0x400, scoped, tag = 'input window, operand 2, single buffered']
    #allocation8 [shape = 'u8[4096]{0}', space=vmem, size = 0x1000, scoped, tag = 'output window, operand 0, single buffered']
    %8 = vsyncpa [#allocation3], 0
    %9 = vsyncpa [#allocation6], 0
    %10 = vsyncpa [#allocation4], 0
    // Predicated region
    $region2: #{_ew_pallas_resident.1} parent=1 // pred_check
      _
    $region3: #{_ew_pallas_resident.1} parent=1 // pred_check_branch
      %12 = sbr.rel (0) target = $region5
    $region4: #{_ew_pallas_resident.1} parent=1 // pred_region
      %s14 = ssub.s32 512, 128
      %15 = vsyncadd [#allocation3], %s14
      %s16 = sshll.u32 [#allocation2], 4
      %s17 = int_to_ptr.vmem [resolvable:$true] %s16
      %22 = dma.hbm_to_vmem [thread:$0]  %s0, 128, %s17, [#allocation3], 64, 64, 4
    $region5: #{_ew_pallas_resident.1} parent=1 // pred_fallthru
      _
    // Predicated region
    $region6: #{_ew_pallas_resident.1} parent=1 // pred_check
      _
    $region7: #{_ew_pallas_resident.1} parent=1 // pred_check_branch
      %24 = sbr.rel (0) target = $region9
    $region8: #{_ew_pallas_resident.1} parent=1 // pred_region
      %s26 = ssub.s32 64, 64
      %27 = vsyncadd [#allocation6], %s26
      %s29 = sshll.u32 [#allocation5], 4
      %s30 = int_to_ptr.vmem [resolvable:$true] %s29
      %32 = dma.hbm_to_vmem [thread:$0]  %s1, 64, %s30, [#allocation6]
    $region9: #{_ew_pallas_resident.1} parent=1 // pred_fallthru
      _
    // Predicated region
    $region10: #{_ew_pallas_resident.1} parent=1 // pred_check
      _
    $region11: #{_ew_pallas_resident.1} parent=1 // pred_check_branch
      %34 = sbr.rel (0) target = $region13
    $region12: #{_ew_pallas_resident.1} parent=1 // pred_region
      %s36 = ssub.s32 16, 16
      %37 = vsyncadd [#allocation6], %s36
      %s39 = sshll.u32 [#allocation7], 4
      %s40 = int_to_ptr.vmem [resolvable:$true] %s39
      %42 = dma.hbm_to_vmem [thread:$0]  %s2, 16, %s40, [#allocation6]
    $region13: #{_ew_pallas_resident.1} parent=1 // pred_fallthru
      _
    // Predicated region
    $region14: #{_ew_pallas_resident.1} parent=1 // pred_check
      _
    $region15: #{_ew_pallas_resident.1} parent=1 // pred_check_branch
      %44 = sbr.rel (0) target = $region17
    $region16: #{_ew_pallas_resident.1} parent=1 // pred_region
      %45 = dma.done [#allocation3], 512
    $region17: #{_ew_pallas_resident.1} parent=1 // pred_fallthru
      _
    // Predicated region
    $region18: #{_ew_pallas_resident.1} parent=1 // pred_check
      _
    $region19: #{_ew_pallas_resident.1} parent=1 // pred_check_branch
      %47 = sbr.rel (0) target = $region21
    $region20: #{_ew_pallas_resident.1} parent=1 // pred_region
      %48 = dma.done [#allocation6], 64
    $region21: #{_ew_pallas_resident.1} parent=1 // pred_fallthru
      _
    // Predicated region
    $region22: #{_ew_pallas_resident.1} parent=1 // pred_check
      _
    $region23: #{_ew_pallas_resident.1} parent=1 // pred_check_branch
      %50 = sbr.rel (0) target = $region25
    $region24: #{_ew_pallas_resident.1} parent=1 // pred_region
      %51 = dma.done [#allocation6], 16
    $region25: #{_ew_pallas_resident.1} parent=1 // pred_fallthru
      _
    %v52 = vld [vmem:[#allocation2] sm:$0xf]
    %v53 = vld [vmem:[#allocation2 + $0x4] sm:$0xf]
    %v54 = vld [vmem:[#allocation2 + $0x8] sm:$0xf]
    %v55 = vld [vmem:[#allocation2 + $0xc] sm:$0xf]
    %v56 = vld [vmem:[#allocation2 + $0x10] sm:$0xf]
    %v57 = vld [vmem:[#allocation2 + $0x14] sm:$0xf]
    %v58 = vld [vmem:[#allocation2 + $0x18] sm:$0xf]
    %v59 = vld [vmem:[#allocation2 + $0x1c] sm:$0xf]
    %v60 = vld [vmem:[#allocation5] sm:$0xf]
    %v61 = vmul.f32 %v52, %v60
    %v62 = vmul.f32 %v53, %v60
    %v63 = vmul.f32 %v54, %v60
    %v64 = vmul.f32 %v55, %v60
    %v65 = vmul.f32 %v56, %v60
    %v66 = vmul.f32 %v57, %v60
    %v67 = vmul.f32 %v58, %v60
    %v68 = vmul.f32 %v59, %v60
    %vm69 = vcmask 257024
    %v70 = vsel %vm69, %v61, 0.0
    %71 = vadd.xlane.f32.xlu0 %v70
    %v72 = vpop.xlane.xlu0 %71
    %v73 = vsel %vm69, %v62, 0.0
    %74 = vadd.xlane.f32.xlu0 %v73
    %v75 = vpop.xlane.xlu0 %74
    %v76 = vsel %vm69, %v63, 0.0
    %77 = vadd.xlane.f32.xlu0 %v76
    %v78 = vpop.xlane.xlu0 %77
    %v79 = vsel %vm69, %v64, 0.0
    %80 = vadd.xlane.f32.xlu0 %v79
    %v81 = vpop.xlane.xlu0 %80
    %v82 = vsel %vm69, %v65, 0.0
    %83 = vadd.xlane.f32.xlu0 %v82
    %v84 = vpop.xlane.xlu0 %83
    %v85 = vsel %vm69, %v66, 0.0
    %86 = vadd.xlane.f32.xlu0 %v85
    %v87 = vpop.xlane.xlu0 %86
    %v88 = vsel %vm69, %v67, 0.0
    %89 = vadd.xlane.f32.xlu0 %v88
    %v90 = vpop.xlane.xlu0 %89
    %v91 = vsel %vm69, %v68, 0.0
    %92 = vadd.xlane.f32.xlu0 %v91
    %v93 = vpop.xlane.xlu0 %92
    %v94 = vadd.f32 %v72, 0.0
    %v95 = vadd.f32 %v75, 0.0
    %v96 = vadd.f32 %v78, 0.0
    %v97 = vadd.f32 %v81, 0.0
    %v98 = vadd.f32 %v84, 0.0
    %v99 = vadd.f32 %v87, 0.0
    %v100 = vadd.f32 %v90, 0.0
    %v101 = vadd.f32 %v93, 0.0
    %v102 = vld [vmem:[#allocation7] sm:$0x1]
    %v104 = vlaneseq
    %v105 = vshrl.u32 %v104, 7
    %v106 = vsub.s32 0, %v105
    %v107 = vrot.slane %v102, %v106
    %109 = vbcast.lane.b32.xlu0 %v107, 256
    %v110 = vpop.permute.xlu0 %109
    %v112 = vadd.f32 %v94, %v110
    %v113 = vadd.f32 %v95, %v110
    %v114 = vadd.f32 %v96, %v110
    %v115 = vadd.f32 %v97, %v110
    %v116 = vadd.f32 %v98, %v110
    %v117 = vadd.f32 %v99, %v110
    %v118 = vadd.f32 %v100, %v110
    %v119 = vadd.f32 %v101, %v110
    %128 = vset.pattern.permute.xlu0 0
    %129 = vperm.xlu0 %128, %v112
    %v130 = vpop.permute.xlu0 %129
    %131 = vset.pattern.permute.xlu0 0
    %132 = vperm.xlu0 %131, %v113
    %v133 = vpop.permute.xlu0 %132
    %134 = vset.pattern.permute.xlu0 0
    %135 = vperm.xlu0 %134, %v114
    %v136 = vpop.permute.xlu0 %135
    %137 = vset.pattern.permute.xlu0 0
    %138 = vperm.xlu0 %137, %v115
    %v139 = vpop.permute.xlu0 %138
    %140 = vset.pattern.permute.xlu0 0
    %141 = vperm.xlu0 %140, %v116
    %v142 = vpop.permute.xlu0 %141
    %143 = vset.pattern.permute.xlu0 0
    %144 = vperm.xlu0 %143, %v117
    %v145 = vpop.permute.xlu0 %144
    %146 = vset.pattern.permute.xlu0 0
    %147 = vperm.xlu0 %146, %v118
    %v148 = vpop.permute.xlu0 %147
    %149 = vset.pattern.permute.xlu0 0
    %150 = vperm.xlu0 %149, %v119
    %v151 = vpop.permute.xlu0 %150
    %v152 = vlaneseq
    %v153 = vand.u32 %v152, 127
    %v154 = vlaneseq
    %v155 = vshrl.u32 %v154, 7
    %v156 = vsub.s32 %v153, %v155
    %v157 = vrot.slane %v130, %v156
    %v158 = vlaneseq
    %v159 = vshrl.u32 %v158, 7
    %v160 = vsub.s32 %v153, %v159
    %v161 = vrot.slane %v133, %v160
    %v162 = vlaneseq
    %v163 = vshrl.u32 %v162, 7
    %v164 = vsub.s32 %v153, %v163
    %v165 = vrot.slane %v136, %v164
    %v166 = vlaneseq
    %v167 = vshrl.u32 %v166, 7
    %v168 = vsub.s32 %v153, %v167
    %v169 = vrot.slane %v139, %v168
    %v170 = vlaneseq
    %v171 = vshrl.u32 %v170, 7
    %v172 = vsub.s32 %v153, %v171
    %v173 = vrot.slane %v142, %v172
    %v174 = vlaneseq
    %v175 = vshrl.u32 %v174, 7
    %v176 = vsub.s32 %v153, %v175
    %v177 = vrot.slane %v145, %v176
    %v178 = vlaneseq
    %v179 = vshrl.u32 %v178, 7
    %v180 = vsub.s32 %v153, %v179
    %v181 = vrot.slane %v148, %v180
    %v182 = vlaneseq
    %v183 = vshrl.u32 %v182, 7
    %v184 = vsub.s32 %v153, %v183
    %v185 = vrot.slane %v151, %v184
    %vm186 = vcmask 1041409
    %v187 = vsel %vm186, %v161, %v157
    %vm188 = vcmask 1042434
    %v189 = vsel %vm188, %v165, %v187
    %vm190 = vcmask 1043459
    %v191 = vsel %vm190, %v169, %v189
    %vm192 = vcmask 1044484
    %v193 = vsel %vm192, %v173, %v191
    %vm194 = vcmask 1045509
    %v195 = vsel %vm194, %v177, %v193
    %vm196 = vcmask 1046534
    %v197 = vsel %vm196, %v181, %v195
    %vm198 = vcmask 1047559
    %v199 = vsel %vm198, %v185, %v197
    %vm201 = vcmask 31744
    %202 = vst.msk [vmem:[#allocation8] sm:$0xff] %vm201, %v199
    // Predicated region
    $region26: #{_ew_pallas_resident.1} parent=1 // pred_check
      _
    $region27: #{_ew_pallas_resident.1} parent=1 // pred_check_branch
      %204 = sbr.rel (0) target = $region29
    $region28: #{_ew_pallas_resident.1} parent=1 // pred_region
      %s206 = ssub.s32 128, 32
      %207 = vsyncadd [#allocation4], %s206
      %s208 = sshll.u32 [#allocation8], 4
      %s209 = int_to_ptr.vmem [resolvable:$true] %s208
      %214 = dma.vmem_to_hbm [thread:$0]  %s209, 32, %s3, [#allocation4], 32, 32, 2
    $region29: #{_ew_pallas_resident.1} parent=1 // pred_fallthru
      _
    // Predicated region
    $region30: #{_ew_pallas_resident.1} parent=1 // pred_check
      _
    $region31: #{_ew_pallas_resident.1} parent=1 // pred_check_branch
      %216 = sbr.rel (0) target = $region33
    $region32: #{_ew_pallas_resident.1} parent=1 // pred_region
      %217 = dma.done [#allocation4], 128
    $region33: #{_ew_pallas_resident.1} parent=1 // pred_fallthru
      _
    %218 = vsyncpa [#allocation3], 1
    %219 = vsyncpa [#allocation6], 1
    %220 = vsyncpa [#allocation4], 1

</llo_original>
